<compile_context>
chip_gen: v7x
topology: tpu7x:2x2x1
jax: 0.10.0
libtpu: 0.0.40
codegen_flags: <defaults>
</compile_context>

<pallas_src>
import functools

import jax
import jax.numpy as jnp
from jax import lax
from jax.experimental import pallas as pl
from jax.experimental.pallas import tpu as pltpu

LANE = 128
SUBLANE = 8


def _round_up(x, m):
    return ((x + m - 1) // m) * m


def _compiler_params(semantics, tile_bytes):
    # Explicit (and conservative) scoped-VMEM budget: plenty of headroom for the
    # double-buffered tiles, capped below v7x's 64 MiB physical VMEM.
    vmem = int(min(48 * 1024 * 1024, max(16 * 1024 * 1024, 4 * tile_bytes)))
    return pltpu.CompilerParams(dimension_semantics=semantics, vmem_limit_bytes=vmem)


# ----------------------------------------------------------------------------
# Kernel 1: tiled matmul + bias (+ ReLU) — used for kernel_size == 1 convs.
# ----------------------------------------------------------------------------
def _mm_bias_act_kernel(x_ref, w_ref, b_ref, o_ref, *, relu):
    acc = jnp.dot(x_ref[...], w_ref[...], preferred_element_type=jnp.float32)
    acc = acc + b_ref[...].astype(jnp.float32)
    if relu:
        acc = jnp.maximum(acc, 0.0)
    o_ref[...] = acc.astype(o_ref.dtype)


def _matmul_bias_act(x2d, w, b2d, *, relu, out_dtype, tm_max=256, tn_max=256):
    """x2d: (M, Cin), w: (Cin, Cout_pad), b2d: (1, Cout_pad); Cout_pad % 128 == 0."""
    M, Cin = x2d.shape
    Cout_pad = w.shape[1]

    tm = min(tm_max, _round_up(M, SUBLANE))          # big M tiles (feedback #1)
    M_pad = _round_up(M, tm)
    if M_pad != M:
        x2d = jnp.pad(x2d, ((0, M_pad - M), (0, 0)))
    tn = tn_max if Cout_pad % tn_max == 0 else LANE  # lane-dense 128-multiple N tiles
    grid = (M_pad // tm, Cout_pad // tn)

    in_itemsize = jnp.dtype(x2d.dtype).itemsize
    out_itemsize = jnp.dtype(out_dtype).itemsize
    tile_bytes = 2 * (tm * Cin + Cin * tn + tn + tm * tn) * 4
    cost = pl.CostEstimate(
        flops=2 * M_pad * Cin * Cout_pad,
        transcendentals=0,
        bytes_accessed=(M_pad * Cin + Cin * Cout_pad) * in_itemsize
        + M_pad * Cout_pad * out_itemsize,
    )

    out = pl.pallas_call(
        functools.partial(_mm_bias_act_kernel, relu=relu),
        out_shape=jax.ShapeDtypeStruct((M_pad, Cout_pad), out_dtype),
        grid=grid,
        in_specs=[
            pl.BlockSpec((tm, Cin), lambda i, j: (i, 0)),
            pl.BlockSpec((Cin, tn), lambda i, j: (0, j)),
            pl.BlockSpec((1, tn), lambda i, j: (0, j)),
        ],
        out_specs=pl.BlockSpec((tm, tn), lambda i, j: (i, j)),
        compiler_params=_compiler_params(("parallel", "parallel"), tile_bytes),
        cost_estimate=cost,
    )(x2d, w, b2d)
    return out[:M]


# ----------------------------------------------------------------------------
# Kernel 2: kernel_size > 1 conv as in-kernel K-tap accumulation (no HBM im2col).
# ----------------------------------------------------------------------------
def _conv_taps_kernel(x_ref, w_ref, b_ref, o_ref, *, K, dilation, T_out, relu):
    # x_ref: (1, T_pad, Cin) — whole zero-padded time slab for this batch element.
    acc = jnp.dot(x_ref[0, 0:T_out, :], w_ref[0], preferred_element_type=jnp.float32)
    for k in range(1, K):
        start = k * dilation
        acc = acc + jnp.dot(
            x_ref[0, start : start + T_out, :], w_ref[k],
            preferred_element_type=jnp.float32,
        )
    acc = acc + b_ref[...].astype(jnp.float32)
    if relu:
        acc = jnp.maximum(acc, 0.0)
    o_ref[0] = acc.astype(o_ref.dtype)


def conv1d_forward(x, weight, bias, *, stride=1, padding=0, dilation=1, relu=False,
                   compute_dtype=None, tm_max=256):
    """Equivalent of Conv.forward (public layout (B, T, C_in) -> (B, T_out, C_out)).

    weight: (C_out, C_in, K) PyTorch Conv1d layout, bias: (C_out,).
    compute_dtype=jnp.bfloat16 casts activations/weights (f32 accumulation kept).
    """
    B, T, Cin = x.shape
    Cout, Cin_w, K = weight.shape
    assert Cin == Cin_w
    out_dtype = x.dtype

    Cout_pad = _round_up(Cout, LANE)                      # lane-dense output (feedback #2)
    w = jnp.transpose(weight, (2, 1, 0))                  # (K, Cin, Cout)
    w = jnp.pad(w, ((0, 0), (0, 0), (0, Cout_pad - Cout)))
    b2d = jnp.pad(bias, (0, Cout_pad - Cout)).astype(jnp.float32).reshape(1, Cout_pad)
    if compute_dtype is not None:
        x = x.astype(compute_dtype)
        w = w.astype(compute_dtype)

    if K == 1 and padding == 0:
        # Fast path (module default conv): no im2col glue at all.
        xs = x[:, ::stride, :] if stride != 1 else x
        T_out = xs.shape[1]
        out2d = _matmul_bias_act(xs.reshape(B * T_out, Cin), w[0], b2d,
                                 relu=relu, out_dtype=out_dtype, tm_max=tm_max)
        return out2d[:, :Cout].reshape(B, T_out, Cout)

    assert stride == 1, "general conv path supports stride=1 (all AlignmentEncoder convs)"
    T_out = T + 2 * padding - dilation * (K - 1)
    T_pad = T + 2 * padding
    x_pad = jnp.pad(x, ((0, 0), (padding, padding), (0, 0)))

    in_itemsize = jnp.dtype(x_pad.dtype).itemsize
    out_itemsize = jnp.dtype(out_dtype).itemsize
    tile_bytes = 2 * (T_pad * Cin + T_out * Cout_pad) * 4 + K * Cin * Cout_pad * 4
    cost = pl.CostEstimate(
        flops=2 * B * T_out * Cin * Cout_pad * K,
        transcendentals=0,
        bytes_accessed=(B * T_pad * Cin + K * Cin * Cout_pad) * in_itemsize
        + B * T_out * Cout_pad * out_itemsize,
    )

    out = pl.pallas_call(
        functools.partial(_conv_taps_kernel, K=K, dilation=dilation, T_out=T_out, relu=relu),
        out_shape=jax.ShapeDtypeStruct((B, T_out, Cout_pad), out_dtype),
        grid=(B,),
        in_specs=[
            pl.BlockSpec((1, T_pad, Cin), lambda b: (b, 0, 0)),
            pl.BlockSpec((K, Cin, Cout_pad), lambda b: (0, 0, 0)),
            pl.BlockSpec((1, Cout_pad), lambda b: (0, 0)),
        ],
        out_specs=pl.BlockSpec((1, T_out, Cout_pad), lambda b: (b, 0, 0)),
        compiler_params=_compiler_params(("parallel",), tile_bytes),
        cost_estimate=cost,
    )(x_pad, w, b2d)
    return out[:, :, :Cout]


# ----------------------------------------------------------------------------
# Kernel 3: attention logits  -temperature * || q[t1] - k[t2] ||^2
# ----------------------------------------------------------------------------
def _attn_logits_kernel(q_ref, k_ref, ksq_ref, o_ref, *, temperature):
    q = q_ref[0]                                   # (tq, C) f32
    k = k_ref[0]                                   # (T2p, C) f32
    qk = lax.dot_general(q, k, (((1,), (1,)), ((), ())),
                         preferred_element_type=jnp.float32)      # (tq, T2p)
    qsq = jnp.sum(q * q, axis=1, keepdims=True)                   # (tq, 1)
    dist = qsq + ksq_ref[0] - 2.0 * qk
    o_ref[0] = (-temperature * dist).astype(o_ref.dtype)


def attention_logits(q_enc, k_enc, *, temperature, tq_max=256):
    """q_enc: (B, T1, C), k_enc: (B, T2, C) -> logits (B, T1, T2)."""
    B, T1, C = q_enc.shape
    T2 = k_enc.shape[1]
    T2p = _round_up(T2, LANE)                       # lane-dense logits rows
    tq = min(tq_max, _round_up(T1, SUBLANE))
    T1p = _round_up(T1, tq)

    qp = jnp.pad(q_enc.astype(jnp.float32), ((0, 0), (0, T1p - T1), (0, 0)))
    kp = jnp.pad(k_enc.astype(jnp.float32), ((0, 0), (0, T2p - T2), (0, 0)))
    ksq = jnp.transpose(jnp.sum(kp * kp, axis=-1, keepdims=True), (0, 2, 1))  # (B, 1, T2p)

    tile_bytes = 2 * (tq * C + tq * T2p) * 4 + (T2p * C + T2p) * 4
    cost = pl.CostEstimate(
        flops=2 * B * T1p * T2p * C,
        transcendentals=0,
        bytes_accessed=(B * T1p * C + B * T2p * C + B * T2p + B * T1p * T2p) * 4,
    )

    out = pl.pallas_call(
        functools.partial(_attn_logits_kernel, temperature=temperature),
        out_shape=jax.ShapeDtypeStruct((B, T1p, T2p), jnp.float32),
        grid=(B, T1p // tq),
        in_specs=[
            pl.BlockSpec((1, tq, C), lambda b, i: (b, i, 0)),
            pl.BlockSpec((1, T2p, C), lambda b, i: (b, 0, 0)),
            pl.BlockSpec((1, 1, T2p), lambda b, i: (b, 0, 0)),
        ],
        out_specs=pl.BlockSpec((1, tq, T2p), lambda b, i: (b, i, 0)),
        compiler_params=_compiler_params(("parallel", "parallel"), tile_bytes),
        cost_estimate=cost,
    )(qp, kp, ksq)
    return out[:, :T1, :T2]


# ----------------------------------------------------------------------------
# AlignmentEncoder forward
# ----------------------------------------------------------------------------
def alignment_encoder_forward(queries, keys, params, *, temperature,
                              mask=None, attn_prior=None, g=None, compute_dtype=None):
    """Matches AlignmentEncoder.forward.

    queries: (B, n_mel, T1)  (mel, channel-first as in the PyTorch code)
    keys   : (B, T2, n_text) (text encodings)
    mask   : (B, T2) bool — True where padded.
    attn_prior: (B, T2, T1) (transposed inside, as in the PyTorch code).
    Returns attn (B,1,T1,T2), attn_logprob (B,1,T1,T2).
    """
    if g is not None:
        # multi-speaker projections (tiny linears — plain JAX glue)
        k_sp = g @ params["key_spk_w"].T + params["key_spk_b"]
        q_sp = g @ params["query_spk_w"].T + params["query_spk_b"]
        keys = keys + k_sp[:, None, :]
        queries = queries + jnp.transpose(q_sp[:, None, :], (0, 2, 1))

    # key_proj: Conv(k=3,p=1) + ReLU -> Conv(k=1)
    k_h = conv1d_forward(keys, params["key0_w"], params["key0_b"],
                         padding=1, relu=True, compute_dtype=compute_dtype)
    keys_enc = conv1d_forward(k_h, params["key1_w"], params["key1_b"],
                              compute_dtype=compute_dtype)                 # (B, T2, C_att)

    # query_proj: Conv(k=3,p=1) + ReLU -> Conv(k=1) + ReLU -> Conv(k=1)
    q_in = jnp.transpose(queries, (0, 2, 1))                               # (B, T1, n_mel)
    q_h = conv1d_forward(q_in, params["query0_w"], params["query0_b"],
                         padding=1, relu=True, compute_dtype=compute_dtype)
    q_h = conv1d_forward(q_h, params["query1_w"], params["query1_b"],
                         relu=True, compute_dtype=compute_dtype)
    queries_enc = conv1d_forward(q_h, params["query2_w"], params["query2_b"],
                                 compute_dtype=compute_dtype)              # (B, T1, C_att)

    logits = attention_logits(queries_enc, keys_enc, temperature=temperature)
    attn = logits[:, None]                                                 # (B,1,T1,T2)
    if attn_prior is not None:
        attn = jax.nn.log_softmax(attn, axis=3) + jnp.log(
            jnp.transpose(attn_prior, (0, 2, 1))[:, None] + 1e-8)
    attn_logprob = attn
    if mask is not None:
        attn = jnp.where(mask[:, None, None, :].astype(bool), -jnp.inf, attn)
    attn = jax.nn.softmax(attn, axis=3)
    return attn, attn_logprob


# ----------------------------------------------------------------------------
# Parameter init matching the PyTorch module (xavier_uniform weights, default bias)
# ----------------------------------------------------------------------------
def init_conv_params(key, in_channels, out_channels, kernel_size, w_init="linear"):
    gain = {"linear": 1.0, "relu": 2.0 ** 0.5}[w_init]
    fan_in = in_channels * kernel_size
    fan_out = out_channels * kernel_size
    bound_w = gain * (6.0 / (fan_in + fan_out)) ** 0.5
    kw, kb = jax.random.split(key)
    weight = jax.random.uniform(kw, (out_channels, in_channels, kernel_size),
                                minval=-bound_w, maxval=bound_w, dtype=jnp.float32)
    bound_b = 1.0 / (fan_in ** 0.5)
    bias = jax.random.uniform(kb, (out_channels,), minval=-bound_b, maxval=bound_b,
                              dtype=jnp.float32)
    return weight, bias


def init_alignment_encoder_params(key, n_mel, n_text, n_att):
    ks = jax.random.split(key, 5)
    p = {}
    p["key0_w"], p["key0_b"] = init_conv_params(ks[0], n_text, 2 * n_text, 3, "relu")
    p["key1_w"], p["key1_b"] = init_conv_params(ks[1], 2 * n_text, n_att, 1, "linear")
    p["query0_w"], p["query0_b"] = init_conv_params(ks[2], n_mel, 2 * n_mel, 3, "relu")
    p["query1_w"], p["query1_b"] = init_conv_params(ks[3], 2 * n_mel, n_mel, 1, "linear")
    p["query2_w"], p["query2_b"] = init_conv_params(ks[4], n_mel, n_att, 1, "linear")
    return p


# ----------------------------------------------------------------------------
# Pure-JAX reference (same semantics as the PyTorch module)
# ----------------------------------------------------------------------------
def _conv1d_ref(x, weight, bias, *, stride=1, padding=0, dilation=1):
    w_wio = jnp.transpose(weight, (2, 1, 0))
    y = lax.conv_general_dilated(
        x, w_wio, window_strides=(stride,), padding=[(padding, padding)],
        rhs_dilation=(dilation,), dimension_numbers=("NWC", "WIO", "NWC"),
        precision=lax.Precision.HIGHEST)
    return y + bias[None, None, :]


def _alignment_encoder_ref(queries, keys, params, *, temperature, mask=None, attn_prior=None):
    k_h = jax.nn.relu(_conv1d_ref(keys, params["key0_w"], params["key0_b"], padding=1))
    keys_enc = _conv1d_ref(k_h, params["key1_w"], params["key1_b"])
    q_in = jnp.transpose(queries, (0, 2, 1))
    q_h = jax.nn.relu(_conv1d_ref(q_in, params["query0_w"], params["query0_b"], padding=1))
    q_h = jax.nn.relu(_conv1d_ref(q_h, params["query1_w"], params["query1_b"]))
    queries_enc = _conv1d_ref(q_h, params["query2_w"], params["query2_b"])
    diff = queries_enc[:, :, None, :] - keys_enc[:, None, :, :]
    attn = (-temperature * jnp.sum(diff ** 2, axis=-1))[:, None]
    if attn_prior is not None:
        attn = jax.nn.log_softmax(attn, axis=3) + jnp.log(
            jnp.transpose(attn_prior, (0, 2, 1))[:, None] + 1e-8)
    attn_logprob = attn
    if mask is not None:
        attn = jnp.where(mask[:, None, None, :].astype(bool), -jnp.inf, attn)
    attn = jax.nn.softmax(attn, axis=3)
    return attn, attn_logprob


if __name__ == "__main__":
    key = jax.random.PRNGKey(0)
    B, n_mel, n_text, n_att = 2, 16, 32, 32
    T1, T2 = 16, 8                 # mel frames / text tokens
    temperature = 0.0005

    kq, kk, kp, kprior = jax.random.split(key, 4)
    queries = jax.random.normal(kq, (B, n_mel, T1), dtype=jnp.float32)   # B x C_mel x T1
    keys = jax.random.normal(kk, (B, T2, n_text), dtype=jnp.float32)     # B x T2 x C_text
    params = init_alignment_encoder_params(kp, n_mel, n_text, n_att)
    attn_prior = jax.random.uniform(kprior, (B, T2, T1), minval=0.1, maxval=1.0,
                                    dtype=jnp.float32)
    mask = jnp.zeros((B, T2), dtype=bool).at[1, T2 - 2:].set(True)       # last 2 tokens padded

    # direct conv-kernel checks (K=3 and K=1 paths)
    c3 = conv1d_forward(keys, params["key0_w"], params["key0_b"], padding=1)
    c3_ref = _conv1d_ref(keys, params["key0_w"], params["key0_b"], padding=1)
    assert jnp.allclose(c3, c3_ref, atol=1e-3, rtol=1e-3)
    c1 = conv1d_forward(jax.nn.relu(c3), params["key1_w"], params["key1_b"])
    c1_ref = _conv1d_ref(jax.nn.relu(c3_ref), params["key1_w"], params["key1_b"])
    assert jnp.allclose(c1, c1_ref, atol=1e-3, rtol=1e-3)

    fwd = jax.jit(functools.partial(alignment_encoder_forward, temperature=temperature))
    attn, attn_logprob = fwd(queries, keys, params, mask=mask, attn_prior=attn_prior)
    attn, attn_logprob = jax.block_until_ready((attn, attn_logprob))

    ref_attn, ref_logprob = _alignment_encoder_ref(
        queries, keys, params, temperature=temperature, mask=mask, attn_prior=attn_prior)

    assert attn.shape == (B, 1, T1, T2) and attn_logprob.shape == (B, 1, T1, T2)
    assert jnp.allclose(attn, ref_attn, atol=1e-3, rtol=1e-3)
    assert jnp.allclose(attn_logprob, ref_logprob, atol=1e-3, rtol=1e-3)
    assert jnp.allclose(jnp.sum(attn, axis=-1), 1.0, atol=1e-3)

    print("KERNEL_OK")
</pallas_src>

<mosaic_0001>
module attributes {stable_mosaic.version = 11 : i64} {
  func.func @_conv_taps_kernel(%arg0: i32, %arg1: memref<1x10x32xf32, #tpu.memory_space<vmem>>, %arg2: memref<3x32x128xf32, #tpu.memory_space<vmem>>, %arg3: memref<1x128xf32, #tpu.memory_space<vmem>>, %arg4: memref<1x8x128xf32, #tpu.memory_space<vmem>>) attributes {dimension_semantics = [#tpu.dimension_semantics<parallel>], iteration_bounds = array<i64: 2>, scalar_prefetch = 0 : i64, scratch_operands = 0 : i64, tpu.core_type = #tpu.core_type<tc>, window_params = [{transform_indices = @transform_0, window_bounds = array<i64: 1, 10, 32>}, {pipeline_mode = #tpu.pipeline_mode<synchronous>, transform_indices = @transform_1, window_bounds = array<i64: 3, 32, 128>}, {pipeline_mode = #tpu.pipeline_mode<synchronous>, transform_indices = @transform_2, window_bounds = array<i64: 1, 128>}, {transform_indices = @transform_3, window_bounds = array<i64: 1, 8, 128>}]} {
    %c0 = arith.constant 0 : index
    %c0_0 = arith.constant 0 : index
    %c0_1 = arith.constant 0 : index
    %0 = vector.load %arg1[%c0, %c0_0, %c0_1] : memref<1x10x32xf32, #tpu.memory_space<vmem>>, vector<1x8x32xf32>
    %1 = vector.shape_cast %0 : vector<1x8x32xf32> to vector<8x32xf32>
    %c0_2 = arith.constant 0 : index
    %c0_3 = arith.constant 0 : index
    %c0_4 = arith.constant 0 : index
    %2 = vector.load %arg2[%c0_2, %c0_3, %c0_4] : memref<3x32x128xf32, #tpu.memory_space<vmem>>, vector<1x32x128xf32>
    %3 = vector.shape_cast %2 : vector<1x32x128xf32> to vector<32x128xf32>
    %cst = arith.constant dense<0.000000e+00> : vector<8x128xf32>
    %4 = tpu.matmul %1, %3, %cst {dimension_numbers = #tpu.dot_dimension_numbers<[1], [0], [0], [1], [0, 0, 1, 1], [], []>} : vector<8x32xf32>, vector<32x128xf32>, vector<8x128xf32> -> vector<8x128xf32>
    %c0_5 = arith.constant 0 : index
    %c1 = arith.constant 1 : index
    %c0_6 = arith.constant 0 : index
    %5 = vector.load %arg1[%c0_5, %c1, %c0_6] : memref<1x10x32xf32, #tpu.memory_space<vmem>>, vector<1x8x32xf32>
    %6 = vector.shape_cast %5 : vector<1x8x32xf32> to vector<8x32xf32>
    %c1_7 = arith.constant 1 : index
    %c0_8 = arith.constant 0 : index
    %c0_9 = arith.constant 0 : index
    %7 = vector.load %arg2[%c1_7, %c0_8, %c0_9] : memref<3x32x128xf32, #tpu.memory_space<vmem>>, vector<1x32x128xf32>
    %8 = vector.shape_cast %7 : vector<1x32x128xf32> to vector<32x128xf32>
    %cst_10 = arith.constant dense<0.000000e+00> : vector<8x128xf32>
    %9 = tpu.matmul %6, %8, %cst_10 {dimension_numbers = #tpu.dot_dimension_numbers<[1], [0], [0], [1], [0, 0, 1, 1], [], []>} : vector<8x32xf32>, vector<32x128xf32>, vector<8x128xf32> -> vector<8x128xf32>
    %10 = arith.addf %4, %9 : vector<8x128xf32>
    %c0_11 = arith.constant 0 : index
    %c2 = arith.constant 2 : index
    %c0_12 = arith.constant 0 : index
    %11 = vector.load %arg1[%c0_11, %c2, %c0_12] : memref<1x10x32xf32, #tpu.memory_space<vmem>>, vector<1x8x32xf32>
    %12 = vector.shape_cast %11 : vector<1x8x32xf32> to vector<8x32xf32>
    %c2_13 = arith.constant 2 : index
    %c0_14 = arith.constant 0 : index
    %c0_15 = arith.constant 0 : index
    %13 = vector.load %arg2[%c2_13, %c0_14, %c0_15] : memref<3x32x128xf32, #tpu.memory_space<vmem>>, vector<1x32x128xf32>
    %14 = vector.shape_cast %13 : vector<1x32x128xf32> to vector<32x128xf32>
    %cst_16 = arith.constant dense<0.000000e+00> : vector<8x128xf32>
    %15 = tpu.matmul %12, %14, %cst_16 {dimension_numbers = #tpu.dot_dimension_numbers<[1], [0], [0], [1], [0, 0, 1, 1], [], []>} : vector<8x32xf32>, vector<32x128xf32>, vector<8x128xf32> -> vector<8x128xf32>
    %16 = arith.addf %10, %15 : vector<8x128xf32>
    %c0_17 = arith.constant 0 : index
    %c0_18 = arith.constant 0 : index
    %17 = vector.load %arg3[%c0_17, %c0_18] : memref<1x128xf32, #tpu.memory_space<vmem>>, vector<1x128xf32>
    %18 = vector.broadcast %17 : vector<1x128xf32> to vector<8x128xf32>
    %19 = arith.addf %16, %18 : vector<8x128xf32>
    %c0_19 = arith.constant 0 : index
    %c0_20 = arith.constant 0 : index
    %c0_21 = arith.constant 0 : index
    %20 = vector.load %arg4[%c0_19, %c0_20, %c0_21] : memref<1x8x128xf32, #tpu.memory_space<vmem>>, vector<1x8x128xf32>
    %21 = vector.shape_cast %20 : vector<1x8x128xf32> to vector<8x128xf32>
    %22 = vector.shape_cast %19 : vector<8x128xf32> to vector<1x8x128xf32>
    tpu.vector_store %arg4[%c0_19, %c0_20, %c0_21], %22 {strides = array<i32>} : memref<1x8x128xf32, #tpu.memory_space<vmem>>, vector<1x8x128xf32>,
    return
  }
  func.func @transform_0(%arg0: i32) -> (i32, i32, i32) {
    %c0_i32 = arith.constant 0 : i32
    %c0_i32_0 = arith.constant 0 : i32
    %c0_i32_1 = arith.constant 0 : i32
    return %arg0, %c0_i32, %c0_i32_0 : i32, i32, i32
  }
  func.func @transform_1(%arg0: i32) -> (i32, i32, i32) {
    %c0_i32 = arith.constant 0 : i32
    %c0_i32_0 = arith.constant 0 : i32
    %c0_i32_1 = arith.constant 0 : i32
    %c0_i32_2 = arith.constant 0 : i32
    return %c0_i32, %c0_i32_0, %c0_i32_1 : i32, i32, i32
  }
  func.func @transform_2(%arg0: i32) -> (i32, i32) {
    %c0_i32 = arith.constant 0 : i32
    %c0_i32_0 = arith.constant 0 : i32
    %c0_i32_1 = arith.constant 0 : i32
    return %c0_i32, %c0_i32_0 : i32, i32
  }
  func.func @transform_3(%arg0: i32) -> (i32, i32, i32) {
    %c0_i32 = arith.constant 0 : i32
    %c0_i32_0 = arith.constant 0 : i32
    %c0_i32_1 = arith.constant 0 : i32
    return %arg0, %c0_i32, %c0_i32_0 : i32, i32, i32
  }
}

</mosaic_0001>

<llo_original>
// kernel: tpu_custom_call.1
$region0: #{tpu_custom_call.1}
  #allocation0 [shape = 'u32[]', space=smem, size = 0x4, offset = 0x4, fixed_abs, tag = 'smem constant byte address 0x4 - core index']
  #allocation1 [shape = 'u32[144,128]{1,0:T(1,128)}', space=vmem, size = 0x12000, scoped, tag = 'internal scratch']
  %s0 = inlined_call_operand.vmem [shape: f32[2,10,32], index: 0, kind: input, shape index: {}]
  %s1 = inlined_call_operand.hbm [shape: f32[3,32,128], index: 1, kind: input, shape index: {}]
  %s2 = inlined_call_operand.vmem [shape: f32[1,128], index: 2, kind: input, shape index: {}]
  %s3 = inlined_call_operand.hbm [shape: f32[2,8,128], index: 3, kind: output, shape index: {}]
  %s4 = sld [smem:[#allocation0]]
  $region49: #{tpu_custom_call.1} parent=0
    _
  %s6 = ssub.s32 1, %s4
  %s7 = scalar_select 0, %s6, %s4
  $region1: #{tpu_custom_call.1} parent=0
    #allocation2 [shape = 'u8[49152]{0}', space=vmem, size = 0xc000, scoped, tag = 'input window, operand 1, single buffered']
    #allocation3 [shape = 's32[2]{0}', space=sflag, size = 0x8, scoped, tag = 'scoped memory for tpu_custom_call.1']
    #allocation4 [shape = 's32[2]{0}', space=sflag, size = 0x8, scoped, tag = 'scoped memory for tpu_custom_call.1']
    #allocation5 [shape = 'u8[8192]{0}', space=vmem, size = 0x2000, scoped, tag = 'output window, operand 0']
    %8 = vsyncpa [#allocation3], 0
    %9 = vsyncpa [#allocation4], 0
    %s10 = scalar_lea.sflag [#allocation4], 1
    %11 = vsyncpa %s10, 0
    loop: start=0, step=1, limit=4
    $region2: #{tpu_custom_call.1} parent=1 // loop_pre_header
      _
    $region3: #{tpu_custom_call.1} parent=1 // loop_header
      %s13 = sphi 0, %s17
      %p14 = scmp.ge.s32.totalorder %s13, 4
      %s23 = sphi 0, %s25
      %s26 = sphi 0, %s23
      %s27 = sphi 0, %s26
      %s43 = sphi 0, %s27
      %s47 = sphi 0, %s47
      %s49 = sphi 0, %s47
      %s50 = sphi 0, %s49
      %s64 = sphi 0, %s50
      %s68 = sphi 0, %s68
      %s70 = sphi 0, %s68
      %s71 = sphi 0, %s70
      %s85 = sphi 0, %s71
      %s91 = sphi 0, %s93
      %s94 = sphi 0, %s91
      %s95 = sphi 0, %s94
      %s111 = sphi 0, %s95
    $region4: #{tpu_custom_call.1} parent=1 // loop_header_branch
      %16 = sbr.rel (%p14) target = $region8
    $region5: #{tpu_custom_call.1} parent=1 // loop_body
      %s18 = ssub.s32 %s13, 1
      %s19 = ssub.s32 %s13, 2
      %s20 = sadd.s32 %s13, 1
      %s21 = ssub.s32 %s13, %s20
      %p22 = scmp.eq.s32.totalorder %s21, 0
      %s24 = sadd.s32 %s23, 1
      %s25 = scalar_select %p22, %s23, %s24
      %p28 = pneg %p22
      %p29 = scmp.eq.s32.totalorder %s13, 1
      %p30 = por %p28, %p29
      %p31 = scmp.ne.s32.totalorder %s23, %s26
      %p32 = scmp.eq.s32.totalorder %s13, 0
      %p33 = por %p31, %p32
      %p34 = scmp.ne.s32.totalorder %s23, %s26
      %p35 = scmp.eq.s32.totalorder %s18, 1
      %p36 = por %p34, %p35
      %p37 = scmp.ne.s32.totalorder %s26, %s27
      %p38 = scmp.eq.s32.totalorder %s18, 0
      %p39 = por %p37, %p38
      %p40 = scmp.ne.s32.totalorder %s26, %s27
      %p41 = scmp.eq.s32.totalorder %s19, 1
      %p42 = por %p40, %p41
      %p44 = scmp.ne.s32.totalorder %s27, %s43
      %p45 = scmp.eq.s32.totalorder %s19, 0
      %p46 = por %p44, %p45
      %s48 = sadd.s32 %s47, 1
      %p51 = scmp.eq.s32.totalorder %s13, 1
      %p52 = scmp.ne.s32.totalorder %s47, %s49
      %p53 = scmp.eq.s32.totalorder %s13, 0
      %p54 = por %p52, %p53
      %p55 = scmp.ne.s32.totalorder %s47, %s49
      %p56 = scmp.eq.s32.totalorder %s18, 1
      %p57 = por %p55, %p56
      %p58 = scmp.ne.s32.totalorder %s49, %s50
      %p59 = scmp.eq.s32.totalorder %s18, 0
      %p60 = por %p58, %p59
      %p61 = scmp.ne.s32.totalorder %s49, %s50
      %p62 = scmp.eq.s32.totalorder %s19, 1
      %p63 = por %p61, %p62
      %p65 = scmp.ne.s32.totalorder %s50, %s64
      %p66 = scmp.eq.s32.totalorder %s19, 0
      %p67 = por %p65, %p66
      %s69 = sadd.s32 %s68, 1
      %p72 = scmp.eq.s32.totalorder %s13, 1
      %p73 = scmp.ne.s32.totalorder %s68, %s70
      %p74 = scmp.eq.s32.totalorder %s13, 0
      %p75 = por %p73, %p74
      %p76 = scmp.ne.s32.totalorder %s68, %s70
      %p77 = scmp.eq.s32.totalorder %s18, 1
      %p78 = por %p76, %p77
      %p79 = scmp.ne.s32.totalorder %s70, %s71
      %p80 = scmp.eq.s32.totalorder %s18, 0
      %p81 = por %p79, %p80
      %p82 = scmp.ne.s32.totalorder %s70, %s71
      %p83 = scmp.eq.s32.totalorder %s19, 1
      %p84 = por %p82, %p83
      %p86 = scmp.ne.s32.totalorder %s71, %s85
      %p87 = scmp.eq.s32.totalorder %s19, 0
      %p88 = por %p86, %p87
      %s89 = ssub.s32 %s13, %s20
      %p90 = scmp.eq.s32.totalorder %s89, 0
      %s92 = sadd.s32 %s91, 1
      %s93 = scalar_select %p90, %s91, %s92
      %p96 = pneg %p90
      %p97 = scmp.eq.s32.totalorder %s13, 1
      %p98 = por %p96, %p97
      %p99 = scmp.ne.s32.totalorder %s91, %s94
      %p100 = scmp.eq.s32.totalorder %s13, 0
      %p101 = por %p99, %p100
      %p102 = scmp.ne.s32.totalorder %s91, %s94
      %p103 = scmp.eq.s32.totalorder %s18, 1
      %p104 = por %p102, %p103
      %p105 = scmp.ne.s32.totalorder %s94, %s95
      %p106 = scmp.eq.s32.totalorder %s18, 0
      %p107 = por %p105, %p106
      %p108 = scmp.ne.s32.totalorder %s94, %s95
      %p109 = scmp.eq.s32.totalorder %s19, 1
      %p110 = por %p108, %p109
      %p112 = scmp.ne.s32.totalorder %s95, %s111
      %p113 = scmp.eq.s32.totalorder %s19, 0
      %p114 = por %p112, %p113
      %p115 = scmp.le.s32.totalorder 1, %s13
      %p116 = scmp.lt.s32.totalorder %s13, 3
      %p117 = pnand %p115, %p116
      %p118 = pneg %p117
      // Predicated region
      $region9: #{tpu_custom_call.1} parent=5 // pred_check
        _
      $region10: #{tpu_custom_call.1} parent=5 // pred_check_branch
        %120 = sbr.rel (%p117) target = $region12
      $region11: #{tpu_custom_call.1} parent=5 // pred_region
        %s121 = ssub.s32 %s13, 1
        // Predicated region
        $region13: #{tpu_custom_call.1} parent=11 // pred_check
          %p122 = pneg %p60
        $region14: #{tpu_custom_call.1} parent=11 // pred_check_branch
          %124 = sbr.rel (%p122) target = $region16
        $region15: #{tpu_custom_call.1} parent=11 // pred_region
          %s126 = ssub.s32 1536, 1536
          %127 = vsyncadd [#allocation3], %s126
          %s128 = sshll.u32 [#allocation2], 4
          %s129 = int_to_ptr.vmem [resolvable:$true] %s128
          %134 = dma.hbm_to_vmem [thread:$0]  %s1, 1536, %s129, [#allocation3], 128, 128, 8
        $region16: #{tpu_custom_call.1} parent=11 // pred_fallthru
          _
        // Predicated region
        $region17: #{tpu_custom_call.1} parent=11 // pred_check
          %p135 = pneg %p81
        $region18: #{tpu_custom_call.1} parent=11 // pred_check_branch
          %137 = sbr.rel (%p135) target = $region20
        $region19: #{tpu_custom_call.1} parent=11 // pred_region
          _
        $region20: #{tpu_custom_call.1} parent=11 // pred_fallthru
          _
      $region12: #{tpu_custom_call.1} parent=5 // pred_fallthru
        _
      %p138 = scmp.lt.s32.totalorder %s13, 2
      // Predicated region
      $region21: #{tpu_custom_call.1} parent=5 // pred_check
        %p139 = pneg %p138
      $region22: #{tpu_custom_call.1} parent=5 // pred_check_branch
        %141 = sbr.rel (%p139) target = $region24
      $region23: #{tpu_custom_call.1} parent=5 // pred_region
        // Predicated region
        $region25: #{tpu_custom_call.1} parent=23 // pred_check
          %p142 = pneg %p33
        $region26: #{tpu_custom_call.1} parent=23 // pred_check_branch
          %144 = sbr.rel (%p142) target = $region28
        $region27: #{tpu_custom_call.1} parent=23 // pred_region
          %p145 = scmp.lt.s32.totalorder %s13, 1
          %s146 = scalar_select %p145, %s13, 1
          %s147 = smul.addr %s146, 2
          %s148 = smul.addr %s147, 8
          %s149 = scalar_lea.vmem %s0, %s148
        $region28: #{tpu_custom_call.1} parent=23 // pred_fallthru
          _
      $region24: #{tpu_custom_call.1} parent=5 // pred_fallthru
        _
      %p150 = scmp.le.s32.totalorder 1, %s13
      %p151 = scmp.lt.s32.totalorder %s13, 3
      %p152 = pnand %p150, %p151
      %p153 = pneg %p152
      // Predicated region
      $region29: #{tpu_custom_call.1} parent=5 // pred_check
        _
      $region30: #{tpu_custom_call.1} parent=5 // pred_check_branch
        %155 = sbr.rel (%p152) target = $region32
      $region31: #{tpu_custom_call.1} parent=5 // pred_region
        %s156 = ssub.s32 %s13, 1
        // Predicated region
        $region33: #{tpu_custom_call.1} parent=31 // pred_check
          %p157 = pneg %p60
        $region34: #{tpu_custom_call.1} parent=31 // pred_check_branch
          %159 = sbr.rel (%p157) target = $region36
        $region35: #{tpu_custom_call.1} parent=31 // pred_region
          %160 = dma.done [#allocation3], 1536
        $region36: #{tpu_custom_call.1} parent=31 // pred_fallthru
          _
        %p161 = scmp.lt.s32.totalorder %s18, 1
        %s162 = scalar_select %p161, %s18, 1
        %s163 = smul.addr %s162, 2
        %s164 = smul.addr %s163, 8
        %s165 = scalar_lea.vmem %s0, %s164
        %p166 = pneg %p39
        %p167 = pneg %p36
        %p168 = pneg %p60
        %p169 = pneg %p57
        %p170 = pneg %p81
        %p171 = pneg %p78
        %p172 = pneg %p107
        %p173 = pneg %p104
        %s174 = sand.u32 %s94, 1
        %s175 = scalar_lea.sflag [#allocation4], %s174
        %s176 = sand.u32 %s94, 1
        %s177 = smul.addr %s176, 8
        %s178 = scalar_lea.vmem [#allocation5], %s177
        %p179 = scmp.lt.s32.totalorder %s18, 1
        %s180 = scalar_select %p179, %s18, 1
        %s181 = smul.addr %s180, 2
        %s182 = smul.addr %s181, 8
        %s183 = scalar_lea.vmem %s0, %s182
        %v184 = vld [vmem:[%s183] sm:$0xff]
        %v185 = vld [vmem:[#allocation2] sm:$0xff]
        %v186 = vld [vmem:[#allocation2 + $0x8] sm:$0xff]
        %v187 = vld [vmem:[#allocation2 + $0x10] sm:$0xff]
        %v188 = vld [vmem:[#allocation2 + $0x18] sm:$0xff]
        %v189 = vld [vmem:[%s183 + $0x1] sm:$0xff]
        %s190 = scalar_lea.vmem [#allocation2], 32
        %v191 = vld [vmem:[%s190] sm:$0xff]
        %v192 = vld [vmem:[%s190 + $0x8] sm:$0xff]
        %v193 = vld [vmem:[%s190 + $0x10] sm:$0xff]
        %v194 = vld [vmem:[%s190 + $0x18] sm:$0xff]
        %vm195 = vcmask 261120
        %v197 = vsel %vm195, %v189, 0
        %199 = vmatprep.subr.mxu0 0.0
        %200 = vmatpush1.msra.mxu0 %v191
        %201 = vmatprep.subr.mxu0 0.0
        %202 = vmatpush1.msra.mxu0 %v192
        %203 = vmatprep.subr.mxu0 0.0
        %204 = vmatpush1.msra.mxu0 %v193
        %205 = vmatprep.subr.mxu0 0.0
        %206 = vmatpush1.msra.mxu0 %v194
        %207 = vmatprep.subr.mxu0 0.0
        %208 = vmatpush1.msra.mxu0 0.0
        %209 = vmatprep.subr.mxu0 0.0
        %210 = vmatpush1.msra.mxu0 0.0
        %211 = vmatprep.subr.mxu0 0.0
        %212 = vmatpush1.msra.mxu0 0.0
        %213 = vmatprep.subr.mxu0 0.0
        %214 = vmatpush1.msra.mxu0 0.0
        %215 = vmatprep.subr.mxu0 0.0
        %216 = vmatpush1.msra.mxu0 0.0
        %217 = vmatprep.subr.mxu0 0.0
        %218 = vmatpush1.msra.mxu0 0.0
        %219 = vmatprep.subr.mxu0 0.0
        %220 = vmatpush1.msra.mxu0 0.0
        %221 = vmatprep.subr.mxu0 0.0
        %222 = vmatpush1.msra.mxu0 0.0
        %223 = vmatprep.subr.mxu0 0.0
        %224 = vmatpush1.msra.mxu0 0.0
        %225 = vmatprep.subr.mxu0 0.0
        %226 = vmatpush1.msra.mxu0 0.0
        %227 = vmatprep.subr.mxu0 0.0
        %228 = vmatpush1.msra.mxu0 0.0
        %229 = vmatprep.subr.mxu0 0.0
        %230 = vmatpush1.msra.mxu0 0.0
        %231 = vmatprep.subr.mxu0 0.0
        %232 = vmatpush1.msra.mxu0 0.0
        %233 = vmatprep.subr.mxu0 0.0
        %234 = vmatpush1.msra.mxu0 0.0
        %235 = vmatprep.subr.mxu0 0.0
        %236 = vmatpush1.msra.mxu0 0.0
        %237 = vmatprep.subr.mxu0 0.0
        %238 = vmatpush1.msra.mxu0 0.0
        %239 = vmatprep.subr.mxu0 0.0
        %240 = vmatpush1.msra.mxu0 0.0
        %241 = vmatprep.subr.mxu0 0.0
        %242 = vmatpush1.msra.mxu0 0.0
        %243 = vmatprep.subr.mxu0 0.0
        %244 = vmatpush1.msra.mxu0 0.0
        %245 = vmatprep.subr.mxu0 0.0
        %246 = vmatpush1.msra.mxu0 0.0
        %247 = vmatprep.subr.mxu0 0.0
        %248 = vmatpush1.msra.mxu0 0.0
        %249 = vmatprep.subr.mxu0 0.0
        %250 = vmatpush1.msra.mxu0 0.0
        %251 = vmatprep.subr.mxu0 0.0
        %252 = vmatpush1.msra.mxu0 0.0
        %253 = vmatprep.subr.mxu0 0.0
        %254 = vmatpush1.msra.mxu0 0.0
        %255 = vmatprep.subr.mxu0 0.0
        %256 = vmatpush1.msra.mxu0 0.0
        %257 = vmatprep.subr.mxu0 0.0
        %258 = vmatpush1.msra.mxu0 0.0
        %259 = vmatprep.subr.mxu0 0.0
        %260 = vmatpush1.msra.mxu0 0.0
        %261 = vmatprep.subr.mxu0 0.0
        %262 = vmatpush1.msra.mxu0 0.0
        %263 = vmatprep.mubr.f32.mxu0 0.0
        %264 = vmatmul.mubr.f32.gmra.mrb[0].mxu0 %v197
        %v265 = vpop.f32.mrb[0].mxu0
        %v266 = vadd.f32 0.0, %v265
        %v267 = vpop.f32.mrb[0].mxu0
        %268 = vdwg.mxu0
        %v270 = vsel %vm195, %v184, 0
        %272 = vmatprep.subr.mxu0 0.0
        %273 = vmatpush1.msra.mxu0 %v185
        %274 = vmatprep.subr.mxu0 0.0
        %275 = vmatpush1.msra.mxu0 %v186
        %276 = vmatprep.subr.mxu0 0.0
        %277 = vmatpush1.msra.mxu0 %v187
        %278 = vmatprep.subr.mxu0 0.0
        %279 = vmatpush1.msra.mxu0 %v188
        %280 = vmatprep.subr.mxu0 0.0
        %281 = vmatpush1.msra.mxu0 0.0
        %282 = vmatprep.subr.mxu0 0.0
        %283 = vmatpush1.msra.mxu0 0.0
        %284 = vmatprep.subr.mxu0 0.0
        %285 = vmatpush1.msra.mxu0 0.0
        %286 = vmatprep.subr.mxu0 0.0
        %287 = vmatpush1.msra.mxu0 0.0
        %288 = vmatprep.subr.mxu0 0.0
        %289 = vmatpush1.msra.mxu0 0.0
        %290 = vmatprep.subr.mxu0 0.0
        %291 = vmatpush1.msra.mxu0 0.0
        %292 = vmatprep.subr.mxu0 0.0
        %293 = vmatpush1.msra.mxu0 0.0
        %294 = vmatprep.subr.mxu0 0.0
        %295 = vmatpush1.msra.mxu0 0.0
        %296 = vmatprep.subr.mxu0 0.0
        %297 = vmatpush1.msra.mxu0 0.0
        %298 = vmatprep.subr.mxu0 0.0
        %299 = vmatpush1.msra.mxu0 0.0
        %300 = vmatprep.subr.mxu0 0.0
        %301 = vmatpush1.msra.mxu0 0.0
        %302 = vmatprep.subr.mxu0 0.0
        %303 = vmatpush1.msra.mxu0 0.0
        %304 = vmatprep.subr.mxu0 0.0
        %305 = vmatpush1.msra.mxu0 0.0
        %306 = vmatprep.subr.mxu0 0.0
        %307 = vmatpush1.msra.mxu0 0.0
        %308 = vmatprep.subr.mxu0 0.0
        %309 = vmatpush1.msra.mxu0 0.0
        %310 = vmatprep.subr.mxu0 0.0
        %311 = vmatpush1.msra.mxu0 0.0
        %312 = vmatprep.subr.mxu0 0.0
        %313 = vmatpush1.msra.mxu0 0.0
        %314 = vmatprep.subr.mxu0 0.0
        %315 = vmatpush1.msra.mxu0 0.0
        %316 = vmatprep.subr.mxu0 0.0
        %317 = vmatpush1.msra.mxu0 0.0
        %318 = vmatprep.subr.mxu0 0.0
        %319 = vmatpush1.msra.mxu0 0.0
        %320 = vmatprep.subr.mxu0 0.0
        %321 = vmatpush1.msra.mxu0 0.0
        %322 = vmatprep.subr.mxu0 0.0
        %323 = vmatpush1.msra.mxu0 0.0
        %324 = vmatprep.subr.mxu0 0.0
        %325 = vmatpush1.msra.mxu0 0.0
        %326 = vmatprep.subr.mxu0 0.0
        %327 = vmatpush1.msra.mxu0 0.0
        %328 = vmatprep.subr.mxu0 0.0
        %329 = vmatpush1.msra.mxu0 0.0
        %330 = vmatprep.subr.mxu0 0.0
        %331 = vmatpush1.msra.mxu0 0.0
        %332 = vmatprep.subr.mxu0 0.0
        %333 = vmatpush1.msra.mxu0 0.0
        %334 = vmatprep.subr.mxu0 0.0
        %335 = vmatpush1.msra.mxu0 0.0
        %336 = vmatprep.mubr.f32.mxu0 0.0
        %337 = vmatmul.mubr.f32.gmra.mrb[0].mxu0 %v270
        %v338 = vpop.f32.mrb[0].mxu0
        %v339 = vadd.f32 %v266, %v338
        %v340 = vpop.f32.mrb[0].mxu0
        %341 = vdwg.mxu0
        %v342 = vld [vmem:[%s183 + $0x2] sm:$0xff]
        %s343 = scalar_lea.vmem [#allocation2], 64
        %v344 = vld [vmem:[%s343] sm:$0xff]
        %v345 = vld [vmem:[%s343 + $0x8] sm:$0xff]
        %v346 = vld [vmem:[%s343 + $0x10] sm:$0xff]
        %v347 = vld [vmem:[%s343 + $0x18] sm:$0xff]
        %v349 = vsel %vm195, %v342, 0
        %351 = vmatprep.subr.mxu0 0.0
        %352 = vmatpush1.msra.mxu0 %v344
        %353 = vmatprep.subr.mxu0 0.0
        %354 = vmatpush1.msra.mxu0 %v345
        %355 = vmatprep.subr.mxu0 0.0
        %356 = vmatpush1.msra.mxu0 %v346
        %357 = vmatprep.subr.mxu0 0.0
        %358 = vmatpush1.msra.mxu0 %v347
        %359 = vmatprep.subr.mxu0 0.0
        %360 = vmatpush1.msra.mxu0 0.0
        %361 = vmatprep.subr.mxu0 0.0
        %362 = vmatpush1.msra.mxu0 0.0
        %363 = vmatprep.subr.mxu0 0.0
        %364 = vmatpush1.msra.mxu0 0.0
        %365 = vmatprep.subr.mxu0 0.0
        %366 = vmatpush1.msra.mxu0 0.0
        %367 = vmatprep.subr.mxu0 0.0
        %368 = vmatpush1.msra.mxu0 0.0
        %369 = vmatprep.subr.mxu0 0.0
        %370 = vmatpush1.msra.mxu0 0.0
        %371 = vmatprep.subr.mxu0 0.0
        %372 = vmatpush1.msra.mxu0 0.0
        %373 = vmatprep.subr.mxu0 0.0
        %374 = vmatpush1.msra.mxu0 0.0
        %375 = vmatprep.subr.mxu0 0.0
        %376 = vmatpush1.msra.mxu0 0.0
        %377 = vmatprep.subr.mxu0 0.0
        %378 = vmatpush1.msra.mxu0 0.0
        %379 = vmatprep.subr.mxu0 0.0
        %380 = vmatpush1.msra.mxu0 0.0
        %381 = vmatprep.subr.mxu0 0.0
        %382 = vmatpush1.msra.mxu0 0.0
        %383 = vmatprep.subr.mxu0 0.0
        %384 = vmatpush1.msra.mxu0 0.0
        %385 = vmatprep.subr.mxu0 0.0
        %386 = vmatpush1.msra.mxu0 0.0
        %387 = vmatprep.subr.mxu0 0.0
        %388 = vmatpush1.msra.mxu0 0.0
        %389 = vmatprep.subr.mxu0 0.0
        %390 = vmatpush1.msra.mxu0 0.0
        %391 = vmatprep.subr.mxu0 0.0
        %392 = vmatpush1.msra.mxu0 0.0
        %393 = vmatprep.subr.mxu0 0.0
        %394 = vmatpush1.msra.mxu0 0.0
        %395 = vmatprep.subr.mxu0 0.0
        %396 = vmatpush1.msra.mxu0 0.0
        %397 = vmatprep.subr.mxu0 0.0
        %398 = vmatpush1.msra.mxu0 0.0
        %399 = vmatprep.subr.mxu0 0.0
        %400 = vmatpush1.msra.mxu0 0.0
        %401 = vmatprep.subr.mxu0 0.0
        %402 = vmatpush1.msra.mxu0 0.0
        %403 = vmatprep.subr.mxu0 0.0
        %404 = vmatpush1.msra.mxu0 0.0
        %405 = vmatprep.subr.mxu0 0.0
        %406 = vmatpush1.msra.mxu0 0.0
        %407 = vmatprep.subr.mxu0 0.0
        %408 = vmatpush1.msra.mxu0 0.0
        %409 = vmatprep.subr.mxu0 0.0
        %410 = vmatpush1.msra.mxu0 0.0
        %411 = vmatprep.subr.mxu0 0.0
        %412 = vmatpush1.msra.mxu0 0.0
        %413 = vmatprep.subr.mxu0 0.0
        %414 = vmatpush1.msra.mxu0 0.0
        %415 = vmatprep.mubr.f32.mxu0 0.0
        %416 = vmatmul.mubr.f32.gmra.mrb[0].mxu0 %v349
        %v417 = vpop.f32.mrb[0].mxu0
        %v418 = vadd.f32 0.0, %v417
        %v419 = vpop.f32.mrb[0].mxu0
        %420 = vdwg.mxu0
        %v421 = vadd.f32 %v339, %v418
        %v422 = vld [vmem:[%s2] sm:$0x1]
        %v424 = vlaneseq
        %v425 = vshrl.u32 %v424, 7
        %v426 = vsub.s32 0, %v425
        %v427 = vrot.slane %v422, %v426
        %v429 = vadd.f32 %v421, %v427
        %430 = vst [vmem:[%s178] sm:$0xff] %v429
        %s431 = sand.u32 %s94, 1
        %s432 = scalar_lea.sflag [#allocation4], %s431
        %s433 = sand.u32 %s94, 1
        %s434 = smul.addr %s433, 8
        %s435 = scalar_lea.vmem [#allocation5], %s434
        // Predicated region
        $region37: #{tpu_custom_call.1} parent=31 // pred_check
          %p436 = pneg %p104
        $region38: #{tpu_custom_call.1} parent=31 // pred_check_branch
          %438 = sbr.rel (%p436) target = $region40
        $region39: #{tpu_custom_call.1} parent=31 // pred_region
          %s440 = ssub.s32 128, 128
          %441 = vsyncadd %s432, %s440
          %s442 = smul.addr %s18, 128
          %s443 = scalar_lea.hbm %s3, %s442
          %s445 = sshll.u32 %s435, 4
          %s446 = int_to_ptr.vmem [resolvable:$true] %s445
          %448 = dma.vmem_to_hbm [thread:$0]  %s446, 128, %s443, %s432
        $region40: #{tpu_custom_call.1} parent=31 // pred_fallthru
          _
      $region32: #{tpu_custom_call.1} parent=5 // pred_fallthru
        _
      %p449 = scmp.le.s32.totalorder 2, %s13
      // Predicated region
      $region41: #{tpu_custom_call.1} parent=5 // pred_check
        %p450 = pneg %p449
      $region42: #{tpu_custom_call.1} parent=5 // pred_check_branch
        %452 = sbr.rel (%p450) target = $region44
      $region43: #{tpu_custom_call.1} parent=5 // pred_region
        %s453 = ssub.s32 %s13, 2
        // Predicated region
        $region45: #{tpu_custom_call.1} parent=43 // pred_check
          %p454 = pneg %p110
        $region46: #{tpu_custom_call.1} parent=43 // pred_check_branch
          %456 = sbr.rel (%p454) target = $region48
        $region47: #{tpu_custom_call.1} parent=43 // pred_region
          %s457 = sand.u32 %s95, 1
          %s458 = scalar_lea.sflag [#allocation4], %s457
          %s459 = sand.u32 %s95, 1
          %s460 = smul.addr %s459, 8
          %s461 = scalar_lea.vmem [#allocation5], %s460
          %462 = dma.done %s458, 128
        $region48: #{tpu_custom_call.1} parent=43 // pred_fallthru
          _
      $region44: #{tpu_custom_call.1} parent=5 // pred_fallthru
        _
    $region6: #{tpu_custom_call.1} parent=1 // loop_footer
      %s17 = sadd.s32 1, %s13
    $region7: #{tpu_custom_call.1} parent=1 // loop_footer_branch
      %12 = sbr.rel target = $region3
    $region8: #{tpu_custom_call.1} parent=1 // loop_exit
      _
    %463 = vsyncpa [#allocation3], 1
    %s464 = scalar_lea.sflag [#allocation3], 1
    %465 = vsyncpa %s464, 1
    %466 = vsyncpa [#allocation4], 1
    %s467 = scalar_lea.sflag [#allocation4], 1
    %468 = vsyncpa %s467, 1

</llo_original>
